<compile_context>
chip_gen: v5e
topology: v5e:2x2
jax: 0.10.0
libtpu: 0.0.40
codegen_flags: <defaults>
</compile_context>

<pallas_src>
import math
import jax
import jax.numpy as jnp
from jax.experimental import pallas as pl
from jax.experimental.pallas import tpu as pltpu


# ----------------------------------------------------------------------------
# Pallas kernel: lane-dense  relu(x_tile @ W_blockdiag) + PE_slab
# ----------------------------------------------------------------------------
def _embedding_kernel(x_ref, w_ref, pe_ref, o_ref):
    # x_ref : (tm, GK)  grouped token features, streamed as f32
    # w_ref : (GK, GD)  block-diagonal replicated projection weight (bf16, resident)
    # pe_ref: (tm, GD)  positional-embedding slab (f32, resident)
    # o_ref : (tm, GD)  output tile (lane-dense)
    x = x_ref[...].astype(w_ref.dtype)          # VPU cast, hidden under the x DMA
    y = jnp.dot(x, w_ref[...], preferred_element_type=jnp.float32)
    o_ref[...] = (jnp.maximum(y, 0.0) + pe_ref[...]).astype(o_ref.dtype)


def _pick_group(L, K, D, max_minor=1024):
    """Pick a token-group size g (divisor of L) so g*K / g*D become lane-dense."""
    best_g, best_score = 1, -1
    for g in range(1, L + 1):
        if L % g:
            continue
        if g * K > max_minor or g * D > max_minor:
            break
        score = 2 * int((g * D) % 128 == 0) + int((g * K) % 128 == 0)
        if score > best_score:
            best_g, best_score = g, score
    return best_g


def embedding_forward(
    x, weight, pe, *,
    target_rows=2048,
    compute_dtype=jnp.bfloat16,
    out_dtype=jnp.float32,
    vmem_budget_bytes=16 * 1024 * 1024,      # clamp sized for v5e's 16 MiB scoped default
):
    """x: (B, L, K) f32; weight: (K, D) f32; pe: (L, D) f32 -> (B, L, D) out_dtype."""
    B, L, K = x.shape
    K2, D = weight.shape
    assert K == K2 and pe.shape == (L, D)

    # --- group G consecutive tokens so minor dims become multiples of 128 ------------
    G = _pick_group(L, K, D)
    Lg = L // G                               # grouped rows per batch element

    # Lane-density guard: pad d_model with zero columns so the output minor dim (G*D_pad)
    # is a multiple of 128 (unmasked stores).  No-op for the default shapes.
    if (G * D) % 128 != 0:
        step = 128 // math.gcd(G, 128)
        D_pad = -(-D // step) * step
        weight = jnp.pad(weight, ((0, 0), (0, D_pad - D)))
        pe = jnp.pad(pe, ((0, 0), (0, D_pad - D)))
    else:
        D_pad = D

    GK, GD = G * K, G * D_pad
    Mg = B * Lg                               # total grouped rows (fused B*L axis)
    w_itemsize = jnp.dtype(compute_dtype).itemsize
    out_itemsize = jnp.dtype(out_dtype).itemsize

    # --- operands (contiguous reshapes only; x stays f32 and is cast in-kernel) ------
    xg = x.reshape(Mg, GK)                                                     # (Mg, GK) f32
    wg = jnp.kron(jnp.eye(G, dtype=weight.dtype), weight).astype(compute_dtype)  # (GK, GD)
    peg = pe.astype(jnp.float32).reshape(Lg, GD)                               # (Lg, GD)

    # --- row-tile size: multiple of Lg (fixed PE phase) and sublane-friendly ----------
    sub = 16 if out_itemsize == 2 else 8
    quantum = math.lcm(Lg, sub)

    def _footprint(rows):
        # assume 2x buffering for everything (sound upper bound on what Mosaic allocates)
        return (2 * rows * GK * 4                      # x tile (f32, streamed)
                + 2 * rows * GD * out_itemsize         # out tile (streamed)
                + 2 * rows * GD * 4                    # PE slab (constant index map)
                + 2 * GK * GD * w_itemsize)            # weight (constant index map)

    if Mg <= quantum:
        tm = Mg                                   # single tile; block == full array dims
    else:
        tm = quantum * max(1, min(target_rows, Mg) // quantum)
        # keep >=2 grid steps when possible so the "parallel" axis shards across 2 TCs (v7x)
        if Mg >= 2 * quantum:
            tm = min(tm, quantum * max(1, Mg // (2 * quantum)))
        while tm > quantum and _footprint(tm) > vmem_budget_bytes:
            tm -= quantum

    n_tiles = -(-Mg // tm)                        # ragged last tile is masked by Pallas

    # resident (tm, GD) PE slab reused by every grid step (tm % Lg == 0 keeps rows aligned)
    pe_slab = jnp.tile(peg, (tm // Lg, 1))

    grid_spec = pltpu.PrefetchScalarGridSpec(
        num_scalar_prefetch=0,
        grid=(n_tiles,),
        in_specs=[
            pl.BlockSpec((tm, GK), lambda i: (i, 0)),   # x rows (streamed, f32)
            pl.BlockSpec((GK, GD), lambda i: (0, 0)),   # weight (resident)
            pl.BlockSpec((tm, GD), lambda i: (0, 0)),   # PE slab (resident)
        ],
        out_specs=pl.BlockSpec((tm, GD), lambda i: (i, 0)),
    )

    cost = pl.CostEstimate(
        flops=int(2 * n_tiles * tm * GK * GD),
        transcendentals=0,
        bytes_accessed=int(xg.size * 4 + wg.size * w_itemsize
                           + pe_slab.size * 4 + Mg * GD * out_itemsize),
    )

    out = pl.pallas_call(
        _embedding_kernel,
        out_shape=jax.ShapeDtypeStruct((Mg, GD), out_dtype),
        grid_spec=grid_spec,
        compiler_params=pltpu.CompilerParams(
            dimension_semantics=("parallel",),            # megacore split of the M-tile grid
            vmem_limit_bytes=max(vmem_budget_bytes + (8 << 20), 24 << 20),
        ),
        cost_estimate=cost,
    )(xg, wg, pe_slab)

    if D_pad != D:
        return out.reshape(B, Lg, G, D_pad)[..., :D].reshape(B, L, D)
    return out.reshape(B, L, D)


# ----------------------------------------------------------------------------
# Parameter / buffer construction (plain JAX glue)
# ----------------------------------------------------------------------------
def init_embedding_weight(key, seq_len, d_model):
    # PyTorch: uniform_(-stdv, stdv), stdv = 1/sqrt(d_model)
    stdv = 1.0 / math.sqrt(d_model)
    return jax.random.uniform(
        key, (seq_len, d_model), dtype=jnp.float32, minval=-stdv, maxval=stdv
    )


def sinusoidal_positional_embedding(length, d_model):
    # Standard Transformer/Informer PositionalEmbedding buffer (pe[:, :L, :]).
    position = jnp.arange(length, dtype=jnp.float32)[:, None]            # (L, 1)
    div_term = jnp.exp(
        jnp.arange(0, d_model, 2, dtype=jnp.float32)
        * -(math.log(10000.0) / d_model)
    )                                                                     # (D/2,)
    angles = position * div_term                                          # (L, D/2)
    pe = jnp.zeros((length, d_model), dtype=jnp.float32)
    pe = pe.at[:, 0::2].set(jnp.sin(angles))
    pe = pe.at[:, 1::2].set(jnp.cos(angles))
    return pe


# ----------------------------------------------------------------------------
# References (pure JAX) for sanity check
# ----------------------------------------------------------------------------
def embedding_reference_bf16(x, weight, pe, compute_dtype=jnp.bfloat16):
    y = jnp.einsum("blk,kd->bld", x.astype(compute_dtype), weight.astype(compute_dtype),
                   preferred_element_type=jnp.float32)
    return jnp.maximum(y, 0.0) + pe.astype(jnp.float32)[None, :, :]


def embedding_reference_f32(x, weight, pe):
    return jnp.maximum(jnp.einsum("blk,kd->bld", x, weight), 0.0) + pe[None, :, :]


if __name__ == "__main__":
    B, L, seq_len, d_model = 2, 8, 16, 32

    key = jax.random.PRNGKey(0)
    kx, kw = jax.random.split(key)

    x = jax.random.normal(kx, (B, L, seq_len), dtype=jnp.float32)
    weight = init_embedding_weight(kw, seq_len, d_model)
    pe = sinusoidal_positional_embedding(L, d_model)

    out = jax.block_until_ready(embedding_forward(x, weight, pe))
    assert out.shape == (B, L, d_model)

    ref = embedding_reference_bf16(x, weight, pe)
    assert jnp.allclose(out, ref, atol=1e-3, rtol=1e-3), "mismatch vs bf16 reference"

    ref32 = embedding_reference_f32(x, weight, pe)
    assert jnp.allclose(out, ref32, atol=5e-2, rtol=5e-2), "mismatch vs f32 reference"

    print("KERNEL_OK")
</pallas_src>

<mosaic_0001>
module attributes {stable_mosaic.version = 11 : i64} {
  func.func @_embedding_kernel(%arg0: i32, %arg1: memref<2x128xf32, #tpu.memory_space<vmem>>, %arg2: memref<128x256xbf16, #tpu.memory_space<vmem>>, %arg3: memref<2x256xf32, #tpu.memory_space<vmem>>, %arg4: memref<2x256xf32, #tpu.memory_space<vmem>>) attributes {dimension_semantics = [#tpu.dimension_semantics<parallel>], iteration_bounds = array<i64: 1>, scalar_prefetch = 0 : i64, scratch_operands = 0 : i64, tpu.core_type = #tpu.core_type<tc>, window_params = [{transform_indices = @transform_0, window_bounds = array<i64: 2, 128>}, {pipeline_mode = #tpu.pipeline_mode<synchronous>, transform_indices = @transform_1, window_bounds = array<i64: 128, 256>}, {pipeline_mode = #tpu.pipeline_mode<synchronous>, transform_indices = @transform_2, window_bounds = array<i64: 2, 256>}, {transform_indices = @transform_3, window_bounds = array<i64: 2, 256>}]} {
    %c0 = arith.constant 0 : index
    %c0_0 = arith.constant 0 : index
    %0 = vector.load %arg1[%c0, %c0_0] : memref<2x128xf32, #tpu.memory_space<vmem>>, vector<2x128xf32>
    %1 = arith.truncf %0 : vector<2x128xf32> to vector<2x128xbf16>
    %c0_1 = arith.constant 0 : index
    %c0_2 = arith.constant 0 : index
    %2 = vector.load %arg2[%c0_1, %c0_2] : memref<128x256xbf16, #tpu.memory_space<vmem>>, vector<128x256xbf16>
    %cst = arith.constant dense<0.000000e+00> : vector<2x256xf32>
    %3 = tpu.matmul %1, %2, %cst {dimension_numbers = #tpu.dot_dimension_numbers<[1], [0], [0], [1], [0, 0, 1, 1], [], []>} : vector<2x128xbf16>, vector<128x256xbf16>, vector<2x256xf32> -> vector<2x256xf32>
    %cst_3 = arith.constant 0.000000e+00 : f32
    %4 = vector.broadcast %cst_3 : f32 to vector<2x256xf32>
    %5 = arith.maximumf %3, %4 : vector<2x256xf32>
    %c0_4 = arith.constant 0 : index
    %c0_5 = arith.constant 0 : index
    %6 = vector.load %arg3[%c0_4, %c0_5] : memref<2x256xf32, #tpu.memory_space<vmem>>, vector<2x256xf32>
    %7 = arith.addf %5, %6 : vector<2x256xf32>
    %c0_6 = arith.constant 0 : index
    %c0_7 = arith.constant 0 : index
    %8 = vector.load %arg4[%c0_6, %c0_7] : memref<2x256xf32, #tpu.memory_space<vmem>>, vector<2x256xf32>
    tpu.vector_store %arg4[%c0_6, %c0_7], %7 {strides = array<i32>} : memref<2x256xf32, #tpu.memory_space<vmem>>, vector<2x256xf32>,
    return
  }
  func.func @transform_0(%arg0: i32) -> (i32, i32) {
    %c0_i32 = arith.constant 0 : i32
    %c0_i32_0 = arith.constant 0 : i32
    return %arg0, %c0_i32 : i32, i32
  }
  func.func @transform_1(%arg0: i32) -> (i32, i32) {
    %c0_i32 = arith.constant 0 : i32
    %c0_i32_0 = arith.constant 0 : i32
    %c0_i32_1 = arith.constant 0 : i32
    return %c0_i32, %c0_i32_0 : i32, i32
  }
  func.func @transform_2(%arg0: i32) -> (i32, i32) {
    %c0_i32 = arith.constant 0 : i32
    %c0_i32_0 = arith.constant 0 : i32
    %c0_i32_1 = arith.constant 0 : i32
    return %c0_i32, %c0_i32_0 : i32, i32
  }
  func.func @transform_3(%arg0: i32) -> (i32, i32) {
    %c0_i32 = arith.constant 0 : i32
    %c0_i32_0 = arith.constant 0 : i32
    return %arg0, %c0_i32 : i32, i32
  }
}

</mosaic_0001>

<llo_original>
// kernel: tpu_custom_call.1
$region0: #{tpu_custom_call.1}
  #allocation0 [shape = 'u32[]', space=smem, size = 0x4, offset = 0x4, fixed_abs, tag = 'smem constant byte address 0x4 - core index']
  #allocation1 [shape = 'u32[72,128]{1,0:T(1,128)}', space=vmem, size = 0x9000, scoped, tag = 'internal scratch']
  %s0 = inlined_call_operand.hbm [shape: f32[2,128], index: 0, kind: input, shape index: {}]
  %s1 = inlined_call_operand.hbm [shape: bf16[128,256], index: 1, kind: input, shape index: {}]
  %s2 = inlined_call_operand.hbm [shape: f32[2,256], index: 2, kind: input, shape index: {}]
  %s3 = inlined_call_operand.hbm [shape: f32[2,256], index: 3, kind: output, shape index: {}]
  %s4 = sld [smem:[#allocation0]]
  $region34: #{tpu_custom_call.1} parent=0
    _
  %s6 = ssub.s32 1, %s4
  %s7 = scalar_select 0, %s6, %s4
  $region1: #{tpu_custom_call.1} parent=0
    #allocation2 [shape = 'u8[1024]{0}', space=vmem, size = 0x400, scoped, tag = 'input window, operand 0, single buffered']
    #allocation3 [shape = 's32[1]{0}', space=sflag, size = 0x4, scoped, tag = 'scoped memory for tpu_custom_call.1']
    #allocation4 [shape = 's32[1]{0}', space=sflag, size = 0x4, scoped, tag = 'scoped memory for tpu_custom_call.1']
    #allocation5 [shape = 'u8[65536]{0}', space=vmem, size = 0x10000, scoped, tag = 'input window, operand 1, single buffered']
    #allocation6 [shape = 's32[1]{0}', space=sflag, size = 0x4, scoped, tag = 'scoped memory for tpu_custom_call.1']
    #allocation7 [shape = 'u8[2048]{0}', space=vmem, size = 0x800, scoped, tag = 'input window, operand 2, single buffered']
    #allocation8 [shape = 'u8[2048]{0}', space=vmem, size = 0x800, scoped, tag = 'output window, operand 0, single buffered']
    %8 = vsyncpa [#allocation3], 0
    %9 = vsyncpa [#allocation6], 0
    %10 = vsyncpa [#allocation4], 0
    // Predicated region
    $region2: #{tpu_custom_call.1} parent=1 // pred_check
      _
    $region3: #{tpu_custom_call.1} parent=1 // pred_check_branch
      %12 = sbr.rel (0) target = $region5
    $region4: #{tpu_custom_call.1} parent=1 // pred_region
      %14 = vsyncadd [#allocation3], 0
      %s16 = sshll.u32 %s0, 4
      %s17 = int_to_ptr.hbm [resolvable:$true] %s16
      %s18 = sshll.u32 [#allocation2], 4
      %s19 = int_to_ptr.vmem [resolvable:$true] %s18
      %21 = dma.hbm_to_vmem [thread:$0]  %s17, 32, %s19, [#allocation3]
    $region5: #{tpu_custom_call.1} parent=1 // pred_fallthru
      _
    // Predicated region
    $region6: #{tpu_custom_call.1} parent=1 // pred_check
      _
    $region7: #{tpu_custom_call.1} parent=1 // pred_check_branch
      %23 = sbr.rel (0) target = $region9
    $region8: #{tpu_custom_call.1} parent=1 // pred_region
      %25 = vsyncadd [#allocation6], 0
      %s26 = sshll.u32 %s1, 4
      %s27 = int_to_ptr.hbm [resolvable:$true] %s26
      %s28 = sshll.u32 [#allocation5], 4
      %s29 = int_to_ptr.vmem [resolvable:$true] %s28
      %34 = dma.hbm_to_vmem [thread:$0]  %s27, 2048, %s29, [#allocation6], 128, 128, 8
    $region9: #{tpu_custom_call.1} parent=1 // pred_fallthru
      _
    // Predicated region
    $region10: #{tpu_custom_call.1} parent=1 // pred_check
      _
    $region11: #{tpu_custom_call.1} parent=1 // pred_check_branch
      %36 = sbr.rel (0) target = $region13
    $region12: #{tpu_custom_call.1} parent=1 // pred_region
      %38 = vsyncadd [#allocation6], 0
      %s40 = sshll.u32 %s2, 4
      %s41 = int_to_ptr.hbm [resolvable:$true] %s40
      %s42 = sshll.u32 [#allocation7], 4
      %s43 = int_to_ptr.vmem [resolvable:$true] %s42
      %45 = dma.hbm_to_vmem [thread:$0]  %s41, 64, %s43, [#allocation6]
    $region13: #{tpu_custom_call.1} parent=1 // pred_fallthru
      _
    // Predicated region
    $region14: #{tpu_custom_call.1} parent=1 // pred_check
      _
    $region15: #{tpu_custom_call.1} parent=1 // pred_check_branch
      %47 = sbr.rel (0) target = $region17
    $region16: #{tpu_custom_call.1} parent=1 // pred_region
      %49 = dma.done [#allocation3], 32
    $region17: #{tpu_custom_call.1} parent=1 // pred_fallthru
      _
    // Predicated region
    $region18: #{tpu_custom_call.1} parent=1 // pred_check
      _
    $region19: #{tpu_custom_call.1} parent=1 // pred_check_branch
      %51 = sbr.rel (0) target = $region21
    $region20: #{tpu_custom_call.1} parent=1 // pred_region
      %53 = dma.done [#allocation6], 2048
    $region21: #{tpu_custom_call.1} parent=1 // pred_fallthru
      _
    // Predicated region
    $region22: #{tpu_custom_call.1} parent=1 // pred_check
      _
    $region23: #{tpu_custom_call.1} parent=1 // pred_check_branch
      %55 = sbr.rel (0) target = $region25
    $region24: #{tpu_custom_call.1} parent=1 // pred_region
      %57 = dma.done [#allocation6], 64
    $region25: #{tpu_custom_call.1} parent=1 // pred_fallthru
      _
    %v58 = vld [vmem:[#allocation2] sm:$0x3]
    %v59 = vpack.c.bf16 %v58, %v58
    %v60 = vld [vmem:[#allocation5] sm:$0xff]
    %v61 = vld [vmem:[#allocation5 + $0x8] sm:$0xff]
    %v62 = vld [vmem:[#allocation5 + $0x10] sm:$0xff]
    %v63 = vld [vmem:[#allocation5 + $0x18] sm:$0xff]
    %v64 = vld [vmem:[#allocation5 + $0x20] sm:$0xff]
    %v65 = vld [vmem:[#allocation5 + $0x28] sm:$0xff]
    %v66 = vld [vmem:[#allocation5 + $0x30] sm:$0xff]
    %v67 = vld [vmem:[#allocation5 + $0x38] sm:$0xff]
    %v68 = vld [vmem:[#allocation5 + $0x40] sm:$0xff]
    %v69 = vld [vmem:[#allocation5 + $0x48] sm:$0xff]
    %v70 = vld [vmem:[#allocation5 + $0x50] sm:$0xff]
    %v71 = vld [vmem:[#allocation5 + $0x58] sm:$0xff]
    %v72 = vld [vmem:[#allocation5 + $0x60] sm:$0xff]
    %v73 = vld [vmem:[#allocation5 + $0x68] sm:$0xff]
    %v74 = vld [vmem:[#allocation5 + $0x70] sm:$0xff]
    %v75 = vld [vmem:[#allocation5 + $0x78] sm:$0xff]
    %v92 = vunpack.c.l.b16 %v60
    %v93 = vunpack.c.h.b16 %v60
    %v94 = vunpack.c.l.b16 %v61
    %v95 = vunpack.c.h.b16 %v61
    %v96 = vunpack.c.l.b16 %v62
    %v97 = vunpack.c.h.b16 %v62
    %v98 = vunpack.c.l.b16 %v63
    %v99 = vunpack.c.h.b16 %v63
    %v100 = vunpack.c.l.b16 %v64
    %v101 = vunpack.c.h.b16 %v64
    %v102 = vunpack.c.l.b16 %v65
    %v103 = vunpack.c.h.b16 %v65
    %v104 = vunpack.c.l.b16 %v66
    %v105 = vunpack.c.h.b16 %v66
    %v106 = vunpack.c.l.b16 %v67
    %v107 = vunpack.c.h.b16 %v67
    %v108 = vunpack.c.l.b16 %v68
    %v109 = vunpack.c.h.b16 %v68
    %v110 = vunpack.c.l.b16 %v69
    %v111 = vunpack.c.h.b16 %v69
    %v112 = vunpack.c.l.b16 %v70
    %v113 = vunpack.c.h.b16 %v70
    %v114 = vunpack.c.l.b16 %v71
    %v115 = vunpack.c.h.b16 %v71
    %v116 = vunpack.c.l.b16 %v72
    %v117 = vunpack.c.h.b16 %v72
    %v118 = vunpack.c.l.b16 %v73
    %v119 = vunpack.c.h.b16 %v73
    %v120 = vunpack.c.l.b16 %v74
    %v121 = vunpack.c.h.b16 %v74
    %v122 = vunpack.c.l.b16 %v75
    %v123 = vunpack.c.h.b16 %v75
    %v124 = vpack.c.b16 %v94, %v92
    %v125 = vpack.c.b16 %v95, %v93
    %v126 = vpack.c.b16 %v98, %v96
    %v127 = vpack.c.b16 %v99, %v97
    %v128 = vpack.c.b16 %v102, %v100
    %v129 = vpack.c.b16 %v103, %v101
    %v130 = vpack.c.b16 %v106, %v104
    %v131 = vpack.c.b16 %v107, %v105
    %v132 = vpack.c.b16 %v110, %v108
    %v133 = vpack.c.b16 %v111, %v109
    %v134 = vpack.c.b16 %v114, %v112
    %v135 = vpack.c.b16 %v115, %v113
    %v136 = vpack.c.b16 %v118, %v116
    %v137 = vpack.c.b16 %v119, %v117
    %v138 = vpack.c.b16 %v122, %v120
    %v139 = vpack.c.b16 %v123, %v121
    %156 = vmatpush.bf16.msra.mxu0 %v138
    %157 = vmatpush.bf16.msra.mxu0 %v136
    %158 = vmatpush.bf16.msra.mxu0 %v134
    %159 = vmatpush.bf16.msra.mxu0 %v132
    %160 = vmatpush.bf16.msra.mxu0 %v130
    %161 = vmatpush.bf16.msra.mxu0 %v128
    %162 = vmatpush.bf16.msra.mxu0 %v126
    %163 = vmatpush.bf16.msra.mxu0 %v124
    %164 = vmatmul.bf16.gmra.mxu0 %v59
    %v165 = vpop.f32.mrf.mxu0
    %v166 = vadd.f32 0.0, %v165
    %v167 = vpop.f32.mrf.mxu0
    %168 = vdwg.mxu0
    %169 = vmatpush.bf16.msra.mxu0 %v139
    %170 = vmatpush.bf16.msra.mxu0 %v137
    %171 = vmatpush.bf16.msra.mxu0 %v135
    %172 = vmatpush.bf16.msra.mxu0 %v133
    %173 = vmatpush.bf16.msra.mxu0 %v131
    %174 = vmatpush.bf16.msra.mxu0 %v129
    %175 = vmatpush.bf16.msra.mxu0 %v127
    %176 = vmatpush.bf16.msra.mxu0 %v125
    %177 = vmatmul.bf16.gmra.mxu0 %v59
    %v178 = vpop.f32.mrf.mxu0
    %v179 = vadd.f32 0.0, %v178
    %v180 = vpop.f32.mrf.mxu0
    %181 = vdwg.mxu0
    %v182 = vmax.f32 %v166, 0.0
    %v183 = vmax.f32 %v179, 0.0
    %v184 = vld [vmem:[#allocation7] sm:$0xf]
    %186 = vst [vmem:[#allocation1] ss:$4 sm:$0xff] %v184
    %v187 = vld.sshfl [vmem:[#allocation1] sm:$0xff pattern:$0x73625140]
    %v188 = vld.sshfl [vmem:[#allocation1 + $0x8] sm:$0xff pattern:$0x73625140]
    %v191 = vadd.f32 %v182, %v187
    %v192 = vadd.f32 %v183, %v188
    %v195 = vrot.slane %v192, 6
    %vm196 = vcmask 1041408
    %v197 = vsel %vm196, %v191, %v195
    %199 = vst [vmem:[#allocation8] sm:$0xf] %v197
    // Predicated region
    $region26: #{tpu_custom_call.1} parent=1 // pred_check
      _
    $region27: #{tpu_custom_call.1} parent=1 // pred_check_branch
      %201 = sbr.rel (0) target = $region29
    $region28: #{tpu_custom_call.1} parent=1 // pred_region
      %203 = vsyncadd [#allocation4], 0
      %s205 = sshll.u32 [#allocation8], 4
      %s206 = int_to_ptr.vmem [resolvable:$true] %s205
      %s207 = sshll.u32 %s3, 4
      %s208 = int_to_ptr.hbm [resolvable:$true] %s207
      %210 = dma.vmem_to_hbm [thread:$0]  %s206, 64, %s208, [#allocation4]
    $region29: #{tpu_custom_call.1} parent=1 // pred_fallthru
      _
    // Predicated region
    $region30: #{tpu_custom_call.1} parent=1 // pred_check
      _
    $region31: #{tpu_custom_call.1} parent=1 // pred_check_branch
      %212 = sbr.rel (0) target = $region33
    $region32: #{tpu_custom_call.1} parent=1 // pred_region
      %214 = dma.done [#allocation4], 64
    $region33: #{tpu_custom_call.1} parent=1 // pred_fallthru
      _
    %215 = vsyncpa [#allocation3], 1
    %216 = vsyncpa [#allocation6], 1
    %217 = vsyncpa [#allocation4], 1

</llo_original>
